<compile_context>
chip_gen: v7x
topology: tpu7x:2x2x1
jax: 0.10.0
libtpu: 0.0.40
codegen_flags: <defaults>
</compile_context>

<pallas_src>
import jax
import jax.numpy as jnp
from jax.experimental import pallas as pl
from jax.experimental.pallas import tpu as pltpu


_TARGET_TILE_BYTES = 2 * 1024 * 1024   # per block, per buffer
_VMEM_LIMIT_BYTES = 32 * 1024 * 1024   # safe on v5e / v6e / v7x


def _identity_kernel(x_ref, o_ref):
    # The only "compute" in Identity.forward: a whole-tile copy.
    o_ref[...] = x_ref[...]


def _single_block_copy(x2d):
    R, C = x2d.shape
    return pl.pallas_call(
        _identity_kernel,
        out_shape=jax.ShapeDtypeStruct((R, C), x2d.dtype),
        in_specs=[pl.BlockSpec((R, C), lambda: (0, 0))],
        out_specs=pl.BlockSpec((R, C), lambda: (0, 0)),
        input_output_aliases={0: 0},  # output aliases input: no extra HBM buffer
        compiler_params=pltpu.CompilerParams(
            vmem_limit_bytes=_VMEM_LIMIT_BYTES),
    )(x2d)


def _row_tiled_copy(x2d, tr):
    R, C = x2d.shape
    return pl.pallas_call(
        _identity_kernel,
        out_shape=jax.ShapeDtypeStruct((R, C), x2d.dtype),
        grid=(pl.cdiv(R, tr),),
        in_specs=[pl.BlockSpec((tr, C), lambda i: (i, 0))],
        out_specs=pl.BlockSpec((tr, C), lambda i: (i, 0)),
        input_output_aliases={0: 0},
        compiler_params=pltpu.CompilerParams(
            dimension_semantics=("parallel",),
            vmem_limit_bytes=_VMEM_LIMIT_BYTES),
    )(x2d)


def _col_tiled_copy(x2d, tc):
    R, C = x2d.shape  # R == 1 on this path
    return pl.pallas_call(
        _identity_kernel,
        out_shape=jax.ShapeDtypeStruct((R, C), x2d.dtype),
        grid=(pl.cdiv(C, tc),),
        in_specs=[pl.BlockSpec((R, tc), lambda i: (0, i))],
        out_specs=pl.BlockSpec((R, tc), lambda i: (0, i)),
        input_output_aliases={0: 0},
        compiler_params=pltpu.CompilerParams(
            dimension_semantics=("parallel",),
            vmem_limit_bytes=_VMEM_LIMIT_BYTES),
    )(x2d)


def identity(x):
    """Pallas Identity: returns a tensor equal to x (same shape & dtype).

    NOTE: the genuinely optimal Identity is simply `return x` (no HBM traffic).
    We keep a Pallas kernel here, but alias output to input and copy through
    large, lane-dense, VMEM-budgeted tiles so the kernel is as cheap as a copy
    can be.
    """
    orig_shape = x.shape
    n = x.size
    if n == 0:
        return x

    itemsize = x.dtype.itemsize
    total_bytes = n * itemsize

    # Pick a lane-dense 2-D view: columns a multiple of 128 when possible.
    cols = None
    for c in (2048, 1024, 512, 256, 128):
        if n % c == 0:
            cols = c
            break

    if cols is not None:
        rows = n // cols
        x2d = x.reshape(rows, cols)
        if total_bytes <= _TARGET_TILE_BYTES:
            out = _single_block_copy(x2d)
        else:
            # total_bytes > 2 MiB with cols <= 2048  ==>  rows >= 128, tr >= 8.
            tr = min(_TARGET_TILE_BYTES // (cols * itemsize), rows)
            tr = max(8, (tr // 8) * 8)
            out = _row_tiled_copy(x2d, tr)
    else:
        # Element count not a multiple of 128: flatten to a single row.
        x2d = x.reshape(1, n)
        if total_bytes <= _TARGET_TILE_BYTES:
            # Small enough to stage whole (block_shape == full dims is legal).
            out = _single_block_copy(x2d)
        else:
            # (8,128)-aligned column tile; last (partial) block is masked.
            tc = 65536 if itemsize == 1 else 16384
            out = _col_tiled_copy(x2d, tc)

    return out.reshape(orig_shape)


def get_flops(x):
    # Mirrors Identity.get_flops: zero FLOPs, plus the forward result.
    return (0, identity(x))


if __name__ == "__main__":
    key = jax.random.PRNGKey(0)

    # Primary test: small NCHW input (batch=2, channels=4, 16x16).
    x = jax.random.normal(key, (2, 4, 16, 16), dtype=jnp.float32)
    y = jax.block_until_ready(identity(x))
    assert y.shape == x.shape
    assert y.dtype == x.dtype
    assert bool(jnp.all(y == x))

    flops, y2 = get_flops(x)
    jax.block_until_ready(y2)
    assert flops == 0
    assert bool(jnp.all(y2 == x))

    # Exercise the row-tiled grid path (> 2 MiB, lane-dense, partial last block).
    k1, k2 = jax.random.split(key)
    xb = jax.random.normal(k1, (768, 1024), dtype=jnp.float32)  # 3 MiB
    yb = jax.block_until_ready(identity(xb))
    assert bool(jnp.all(yb == xb))

    # Exercise the odd-size path (element count not a multiple of 128).
    xo = jax.random.normal(k2, (3, 5, 7), dtype=jnp.float32)
    yo = jax.block_until_ready(identity(xo))
    assert yo.shape == xo.shape
    assert bool(jnp.all(yo == xo))

    print("KERNEL_OK")
</pallas_src>

<mosaic_0001>
module attributes {stable_mosaic.version = 11 : i64} {
  func.func @_identity_kernel(%arg0: memref<1x2048xf32, #tpu.memory_space<vmem>>, %arg1: memref<1x2048xf32, #tpu.memory_space<vmem>>) attributes {dimension_semantics = [], scalar_prefetch = 0 : i64, scratch_operands = 0 : i64, tpu.core_type = #tpu.core_type<tc>} {
    %c0 = arith.constant 0 : index
    %c0_0 = arith.constant 0 : index
    %0 = vector.load %arg0[%c0, %c0_0] : memref<1x2048xf32, #tpu.memory_space<vmem>>, vector<1x2048xf32>
    %c0_1 = arith.constant 0 : index
    %c0_2 = arith.constant 0 : index
    %1 = vector.load %arg1[%c0_1, %c0_2] : memref<1x2048xf32, #tpu.memory_space<vmem>>, vector<1x2048xf32>
    tpu.vector_store %arg1[%c0_1, %c0_2], %0 {strides = array<i32>} : memref<1x2048xf32, #tpu.memory_space<vmem>>, vector<1x2048xf32>,
    return
  }
}

</mosaic_0001>

<llo_original>
// kernel: tpu_custom_call.1
$region0: #{tpu_custom_call.1}
  #allocation0 [shape = 'u32[]', space=smem, size = 0x4, offset = 0x4, fixed_abs, tag = 'smem constant byte address 0x4 - core index']
  #allocation1 [shape = 'u32[144,128]{1,0:T(1,128)}', space=vmem, size = 0x12000, scoped, tag = 'internal scratch']
  %s0 = inlined_call_operand.hbm [shape: f32[1,2048], index: 0, kind: input, shape index: {}, may-alias: {0,1}]
  %s1 = inlined_call_operand.hbm [shape: f32[1,2048], index: 1, kind: output, shape index: {}, may-alias: {0,1}]
  %s2 = sld [smem:[#allocation0]]
  $region18: #{tpu_custom_call.1} parent=0
    _
  %s4 = ssub.s32 1, %s2
  %s5 = scalar_select 0, %s4, %s2
  $region1: #{tpu_custom_call.1} parent=0
    #allocation2 [shape = 'u8[8192]{0}', space=vmem, size = 0x2000, scoped, tag = 'input window, operand 0, single buffered']
    #allocation3 [shape = 's32[1]{0}', space=sflag, size = 0x4, scoped, tag = 'scoped memory for tpu_custom_call.1']
    #allocation4 [shape = 's32[1]{0}', space=sflag, size = 0x4, scoped, tag = 'scoped memory for tpu_custom_call.1']
    #allocation5 [shape = 'u8[8192]{0}', space=vmem, size = 0x2000, scoped, tag = 'output window, operand 0, single buffered']
    %6 = vsyncpa [#allocation3], 0
    %7 = vsyncpa [#allocation4], 0
    // Predicated region
    $region2: #{tpu_custom_call.1} parent=1 // pred_check
      _
    $region3: #{tpu_custom_call.1} parent=1 // pred_check_branch
      %9 = sbr.rel (0) target = $region5
    $region4: #{tpu_custom_call.1} parent=1 // pred_region
      %s11 = ssub.s32 256, 256
      %12 = vsyncadd [#allocation3], %s11
      %s14 = sshll.u32 [#allocation2], 4
      %s15 = int_to_ptr.vmem [resolvable:$true] %s14
      %17 = dma.hbm_to_vmem [thread:$0]  %s0, 256, %s15, [#allocation3]
    $region5: #{tpu_custom_call.1} parent=1 // pred_fallthru
      _
    // Predicated region
    $region6: #{tpu_custom_call.1} parent=1 // pred_check
      _
    $region7: #{tpu_custom_call.1} parent=1 // pred_check_branch
      %19 = sbr.rel (0) target = $region9
    $region8: #{tpu_custom_call.1} parent=1 // pred_region
      %20 = dma.done [#allocation3], 256
    $region9: #{tpu_custom_call.1} parent=1 // pred_fallthru
      _
    %v21 = vld [vmem:[#allocation2] sm:$0xff]
    %v22 = vld [vmem:[#allocation2 + $0x8] sm:$0xff]
    %23 = vst [vmem:[#allocation5] sm:$0xff] %v21
    %24 = vst [vmem:[#allocation5 + $0x8] sm:$0xff] %v22
    // Predicated region
    $region10: #{tpu_custom_call.1} parent=1 // pred_check
      _
    $region11: #{tpu_custom_call.1} parent=1 // pred_check_branch
      %26 = sbr.rel (0) target = $region13
    $region12: #{tpu_custom_call.1} parent=1 // pred_region
      %s28 = ssub.s32 256, 256
      %29 = vsyncadd [#allocation4], %s28
      %s31 = sshll.u32 [#allocation5], 4
      %s32 = int_to_ptr.vmem [resolvable:$true] %s31
      %34 = dma.vmem_to_hbm [thread:$0]  %s32, 256, %s1, [#allocation4]
    $region13: #{tpu_custom_call.1} parent=1 // pred_fallthru
      _
    // Predicated region
    $region14: #{tpu_custom_call.1} parent=1 // pred_check
      _
    $region15: #{tpu_custom_call.1} parent=1 // pred_check_branch
      %36 = sbr.rel (0) target = $region17
    $region16: #{tpu_custom_call.1} parent=1 // pred_region
      %37 = dma.done [#allocation4], 256
    $region17: #{tpu_custom_call.1} parent=1 // pred_fallthru
      _
    %38 = vsyncpa [#allocation3], 1
    %39 = vsyncpa [#allocation4], 1

</llo_original>
